<compile_context>
chip_gen: v7x
topology: tpu7x:2x2x1
jax: 0.10.0
libtpu: 0.0.40
codegen_flags: <defaults>
</compile_context>

<pallas_src>
import jax
import jax.numpy as jnp
from jax.experimental import pallas as pl
from jax.experimental.pallas import tpu as pltpu

EPS = 1e-12                          # F.normalize default eps
_TARGET_BLOCK_BYTES = 8 * 1024 * 1024   # aim for multi-MiB streaming blocks
_FALLBACK_VMEM_BYTES = 64 * 1024 * 1024  # conservative (v7x per-TC VMEM)

_VMEM_CAP_CACHE = None


def _vmem_capacity_bytes():
    """Per-core VMEM capacity; conservative fallback if the query fails."""
    global _VMEM_CAP_CACHE
    if _VMEM_CAP_CACHE is None:
        cap = 0
        try:
            cap = int(getattr(pltpu.get_tpu_info(), "vmem_capacity_bytes", 0))
        except Exception:
            cap = 0
        _VMEM_CAP_CACHE = cap if cap > 0 else _FALLBACK_VMEM_BYTES
    return _VMEM_CAP_CACHE


def _budgets():
    cap = _vmem_capacity_bytes()
    block_budget = cap // 2            # double-buffered in+out blocks + temps
    vmem_limit = (cap * 3) // 4        # scoped limit, leaves headroom
    return block_budget, vmem_limit


# ---------------------------------------------------------------------------
# Single-pass kernel: full reduction axis (dim 0) resident per feature tile.
# ---------------------------------------------------------------------------
def _l2norm_kernel(x_ref, o_ref):
    x = x_ref[...]                                   # (N, tile_d), native dtype
    xf = x.astype(jnp.float32)
    sq = jnp.sum(xf * xf, axis=0, keepdims=True)     # (1, tile_d) f32
    # max(||x||, EPS) == sqrt(max(||x||^2, EPS^2)); 1e-24 is a normal f32.
    inv = jax.lax.rsqrt(jnp.maximum(sq, EPS * EPS))  # one rsqrt per column
    if x.dtype == jnp.float32:
        o_ref[...] = xf * inv
    else:
        # Low-precision-native VPU multiply (halves vreg/VMEM pressure on
        # v6e/v7x; on v5e the VPU upconverts anyway, cost is the same).
        o_ref[...] = (x * inv.astype(x.dtype)).astype(o_ref.dtype)


# ---------------------------------------------------------------------------
# 1-D kernel: norm over ALL elements, lane-dense (rows, 128) layout.
# ---------------------------------------------------------------------------
def _l2norm_1d_kernel(x_ref, o_ref):
    xf = x_ref[...].astype(jnp.float32)              # zero-padded, (rows, 128)
    ss = jnp.sum(xf * xf, keepdims=True)             # (1, 1) total squared sum
    inv = jax.lax.rsqrt(jnp.maximum(ss, EPS * EPS))
    o_ref[...] = (xf * inv).astype(o_ref.dtype)


# ---------------------------------------------------------------------------
# Two-pass fallback kernels (very large N: full columns don't fit in VMEM).
# ---------------------------------------------------------------------------
def _make_sqsum_kernel(n_total, tile_n):
    def kernel(x_ref, ss_ref):
        i = pl.program_id(1)                         # N-tile axis (arbitrary, last)

        @pl.when(i == 0)
        def _():
            ss_ref[...] = jnp.zeros_like(ss_ref)

        xf = x_ref[...].astype(jnp.float32)
        if n_total % tile_n != 0:
            rows = jax.lax.broadcasted_iota(jnp.int32, xf.shape, 0) + i * tile_n
            xf = jnp.where(rows < n_total, xf, 0.0)
        ss_ref[...] += jnp.sum(xf * xf, axis=0, keepdims=True)

    return kernel


def _scale_kernel(x_ref, ss_ref, o_ref):
    inv = jax.lax.rsqrt(jnp.maximum(ss_ref[...], EPS * EPS))   # (1, tile_d)
    x = x_ref[...]
    if x.dtype == jnp.float32:
        o_ref[...] = x * inv
    else:
        o_ref[...] = (x * inv.astype(x.dtype)).astype(o_ref.dtype)


# ---------------------------------------------------------------------------
# Wrapper
# ---------------------------------------------------------------------------
def _round_tile_d(D, want):
    """Round a desired lane-tile width to a legal block width."""
    if D <= 128 or want >= D:
        return D                        # full-extent block is always legal
    return max(128, (min(want, D) // 128) * 128)


def _l2norm_1d(x, vmem_limit):
    n = x.shape[0]
    pad = (-n) % (8 * 128)
    xp = jnp.pad(x, (0, pad)) if pad else x
    rows = xp.shape[0] // 128
    x2 = xp.reshape(rows, 128)
    # TODO(synk): very large 1-D vectors would need a tiled reduction; the
    # BarlowTwins head only sees small vectors here, so a single block is fine.
    out = pl.pallas_call(
        _l2norm_1d_kernel,
        out_shape=jax.ShapeDtypeStruct((rows, 128), x.dtype),
        compiler_params=pltpu.CompilerParams(vmem_limit_bytes=vmem_limit),
    )(x2)
    return out.reshape(-1)[:n]


def l2norm(x: jax.Array, tile_d: int | None = None, two_pass: bool | None = None):
    """F.normalize(x, p=2, dim=0, eps=1e-12) over dim 0 of x."""
    block_budget, vmem_limit = _budgets()
    orig_shape = x.shape

    if x.ndim == 1:
        return _l2norm_1d(x, vmem_limit)

    x2 = x.reshape(x.shape[0], -1)
    N, D = x2.shape
    itemsize = x2.dtype.itemsize

    # Per-column VMEM cost of one grid step: double-buffered in + out blocks
    # plus f32 temporaries (cast + square). Low-precision inputs need the full
    # +8 B/elem for the f32 materializations; f32 inputs only the square temp.
    f32_temp = 8 if itemsize < 4 else 4
    per_col = N * (2 * itemsize + 2 * itemsize + f32_temp)
    fits_single_pass = (block_budget // per_col) >= min(D, 128)
    if two_pass is None:
        two_pass = not fits_single_pass

    if not two_pass:
        # -------- single pass: (N, tile_d) blocks, reduce dim 0 in-kernel ----
        if tile_d is None:
            max_cols_fit = max(1, int(block_budget // per_col))
            target_cols = max(1, _TARGET_BLOCK_BYTES // max(1, N * itemsize))
            td = _round_tile_d(D, min(D, max_cols_fit, target_cols))
            # Aim for >= 4 grid steps (>= 2 per TensorCore on v7x) so each
            # core can double-buffer (prefetch next / writeback previous).
            if D >= 512:
                while td > 128 and pl.cdiv(D, td) < 4:
                    td = max(128, ((td // 2) // 128) * 128)
        else:
            td = tile_d

        cost = pl.CostEstimate(flops=int(3 * N * D), transcendentals=int(D),
                               bytes_accessed=int(2 * N * D * itemsize))
        out = pl.pallas_call(
            _l2norm_kernel,
            out_shape=jax.ShapeDtypeStruct((N, D), x2.dtype),
            grid_spec=pl.GridSpec(
                grid=(pl.cdiv(D, td),),
                in_specs=[pl.BlockSpec((N, td), lambda j: (0, j))],
                out_specs=pl.BlockSpec((N, td), lambda j: (0, j)),
            ),
            compiler_params=pltpu.CompilerParams(
                dimension_semantics=("parallel",),
                vmem_limit_bytes=vmem_limit,
            ),
            cost_estimate=cost,
        )(x2)
        return out.reshape(orig_shape)

    # -------- two-pass fallback: reduce kernel + scale kernel ----------------
    # Large tiles (multi-MiB blocks) sized against the per-generation budget.
    tn = N if N <= 512 else 512                       # multiple of 8 (or full N)
    per_elem = 4 * itemsize + f32_temp                # dbl-buffered in/out + temps
    td = _round_tile_d(D, 2048)
    while td > 128 and tn * td * per_elem > block_budget:
        td = max(128, ((td // 2) // 128) * 128)
    while tn > 256 and tn * td * per_elem > block_budget:
        tn = tn // 2                                   # stays a multiple of 8

    # Pass 1: per-column squared sums, accumulator resident across the N axis.
    sqsum = pl.pallas_call(
        _make_sqsum_kernel(N, tn),
        out_shape=jax.ShapeDtypeStruct((1, D), jnp.float32),
        grid_spec=pl.GridSpec(
            grid=(pl.cdiv(D, td), pl.cdiv(N, tn)),    # reduction axis last
            in_specs=[pl.BlockSpec((tn, td), lambda j, i: (i, j))],
            out_specs=pl.BlockSpec((1, td), lambda j, i: (0, j)),
        ),
        compiler_params=pltpu.CompilerParams(
            dimension_semantics=("parallel", "arbitrary"),
            vmem_limit_bytes=vmem_limit,
        ),
        cost_estimate=pl.CostEstimate(
            flops=int(2 * N * D), transcendentals=0,
            bytes_accessed=int(N * D * itemsize + 4 * D)),
    )(x2)

    # Pass 2: scale every (tile_n, tile_d) block by rsqrt of its column sums.
    out = pl.pallas_call(
        _scale_kernel,
        out_shape=jax.ShapeDtypeStruct((N, D), x2.dtype),
        grid_spec=pl.GridSpec(
            grid=(pl.cdiv(N, tn), pl.cdiv(D, td)),
            in_specs=[pl.BlockSpec((tn, td), lambda i, j: (i, j)),
                      pl.BlockSpec((1, td), lambda i, j: (0, j))],
            out_specs=pl.BlockSpec((tn, td), lambda i, j: (i, j)),
        ),
        compiler_params=pltpu.CompilerParams(
            dimension_semantics=("parallel", "parallel"),
            vmem_limit_bytes=vmem_limit,
        ),
        cost_estimate=pl.CostEstimate(
            flops=int(N * D), transcendentals=int(D),
            bytes_accessed=int(2 * N * D * itemsize + 4 * D)),
    )(x2, sqsum)
    return out.reshape(orig_shape)


if __name__ == "__main__":
    # L2Norm has no parameters; deterministic example input (batch=8, feat=256).
    key = jax.random.PRNGKey(0)
    N, D = 8, 256
    x = jax.random.normal(key, (N, D), dtype=jnp.float32)

    ref = x / jnp.maximum(jnp.sqrt(jnp.sum(x * x, axis=0, keepdims=True)), EPS)

    # Single-pass (default) path.
    out = jax.block_until_ready(l2norm(x))
    assert out.shape == x.shape and out.dtype == x.dtype
    assert jnp.allclose(out, ref, atol=1e-5, rtol=1e-5)

    # Large-N two-pass fallback, forced at small shape for verification.
    out2 = jax.block_until_ready(l2norm(x, two_pass=True))
    assert jnp.allclose(out2, ref, atol=1e-5, rtol=1e-5)

    # Feature dim not a multiple of 128 (full-extent single block, no padding).
    x3 = jax.random.normal(jax.random.PRNGKey(1), (8, 200), dtype=jnp.float32)
    ref3 = x3 / jnp.maximum(jnp.sqrt(jnp.sum(x3 * x3, axis=0, keepdims=True)), EPS)
    out3 = jax.block_until_ready(l2norm(x3))
    assert jnp.allclose(out3, ref3, atol=1e-5, rtol=1e-5)

    # 1-D input: norm over all elements, lane-dense padded layout.
    x4 = jax.random.normal(jax.random.PRNGKey(2), (300,), dtype=jnp.float32)
    ref4 = x4 / jnp.maximum(jnp.sqrt(jnp.sum(x4 * x4)), EPS)
    out4 = jax.block_until_ready(l2norm(x4))
    assert out4.shape == x4.shape and out4.dtype == x4.dtype
    assert jnp.allclose(out4, ref4, atol=1e-5, rtol=1e-5)

    print("KERNEL_OK")
</pallas_src>

<mosaic_0001>
module attributes {stable_mosaic.version = 11 : i64} {
  func.func @_l2norm_kernel(%arg0: i32, %arg1: memref<8x256xf32, #tpu.memory_space<vmem>>, %arg2: memref<8x256xf32, #tpu.memory_space<vmem>>) attributes {dimension_semantics = [#tpu.dimension_semantics<parallel>], iteration_bounds = array<i64: 1>, scalar_prefetch = 0 : i64, scratch_operands = 0 : i64, tpu.core_type = #tpu.core_type<tc>, window_params = [{transform_indices = @transform_0, window_bounds = array<i64: 8, 256>}, {transform_indices = @transform_1, window_bounds = array<i64: 8, 256>}]} {
    %c0 = arith.constant 0 : index
    %c0_0 = arith.constant 0 : index
    %0 = vector.load %arg1[%c0, %c0_0] : memref<8x256xf32, #tpu.memory_space<vmem>>, vector<8x256xf32>
    %1 = arith.mulf %0, %0 : vector<8x256xf32>
    %cst = arith.constant dense<0.000000e+00> : vector<256xf32>
    %2 = vector.multi_reduction <add>, %1, %cst [0] : vector<8x256xf32> to vector<256xf32>
    %3 = vector.shape_cast %2 : vector<256xf32> to vector<1x256xf32>
    %cst_1 = arith.constant 1.000000e-24 : f32
    %4 = vector.broadcast %cst_1 : f32 to vector<1x256xf32>
    %5 = arith.maximumf %3, %4 : vector<1x256xf32>
    %6 = math.rsqrt %5 : vector<1x256xf32>
    %7 = vector.broadcast %6 : vector<1x256xf32> to vector<8x256xf32>
    %8 = arith.mulf %0, %7 : vector<8x256xf32>
    %c0_2 = arith.constant 0 : index
    %c0_3 = arith.constant 0 : index
    %9 = vector.load %arg2[%c0_2, %c0_3] : memref<8x256xf32, #tpu.memory_space<vmem>>, vector<8x256xf32>
    tpu.vector_store %arg2[%c0_2, %c0_3], %8 {strides = array<i32>} : memref<8x256xf32, #tpu.memory_space<vmem>>, vector<8x256xf32>,
    return
  }
  func.func @transform_0(%arg0: i32) -> (i32, i32) {
    %c0_i32 = arith.constant 0 : i32
    %c0_i32_0 = arith.constant 0 : i32
    return %c0_i32, %arg0 : i32, i32
  }
  func.func @transform_1(%arg0: i32) -> (i32, i32) {
    %c0_i32 = arith.constant 0 : i32
    %c0_i32_0 = arith.constant 0 : i32
    return %c0_i32, %arg0 : i32, i32
  }
}

</mosaic_0001>

<llo_original>
// kernel: tpu_custom_call.1
$region0: #{tpu_custom_call.1}
  #allocation0 [shape = 'u32[]', space=smem, size = 0x4, offset = 0x4, fixed_abs, tag = 'smem constant byte address 0x4 - core index']
  #allocation1 [shape = 'u32[144,128]{1,0:T(1,128)}', space=vmem, size = 0x12000, scoped, tag = 'internal scratch']
  %s0 = inlined_call_operand.hbm [shape: f32[8,256], index: 0, kind: input, shape index: {}]
  %s1 = inlined_call_operand.hbm [shape: f32[8,256], index: 1, kind: output, shape index: {}]
  %s2 = sld [smem:[#allocation0]]
  $region18: #{tpu_custom_call.1} parent=0
    _
  %s4 = ssub.s32 1, %s2
  %s5 = scalar_select 0, %s4, %s2
  $region1: #{tpu_custom_call.1} parent=0
    #allocation2 [shape = 'u8[8192]{0}', space=vmem, size = 0x2000, scoped, tag = 'input window, operand 0, single buffered']
    #allocation3 [shape = 's32[1]{0}', space=sflag, size = 0x4, scoped, tag = 'scoped memory for tpu_custom_call.1']
    #allocation4 [shape = 's32[1]{0}', space=sflag, size = 0x4, scoped, tag = 'scoped memory for tpu_custom_call.1']
    #allocation5 [shape = 'u8[8192]{0}', space=vmem, size = 0x2000, scoped, tag = 'output window, operand 0, single buffered']
    %6 = vsyncpa [#allocation3], 0
    %7 = vsyncpa [#allocation4], 0
    // Predicated region
    $region2: #{tpu_custom_call.1} parent=1 // pred_check
      _
    $region3: #{tpu_custom_call.1} parent=1 // pred_check_branch
      %9 = sbr.rel (0) target = $region5
    $region4: #{tpu_custom_call.1} parent=1 // pred_region
      %s11 = ssub.s32 256, 256
      %12 = vsyncadd [#allocation3], %s11
      %s14 = sshll.u32 [#allocation2], 4
      %s15 = int_to_ptr.vmem [resolvable:$true] %s14
      %17 = dma.hbm_to_vmem [thread:$0]  %s0, 256, %s15, [#allocation3]
    $region5: #{tpu_custom_call.1} parent=1 // pred_fallthru
      _
    // Predicated region
    $region6: #{tpu_custom_call.1} parent=1 // pred_check
      _
    $region7: #{tpu_custom_call.1} parent=1 // pred_check_branch
      %19 = sbr.rel (0) target = $region9
    $region8: #{tpu_custom_call.1} parent=1 // pred_region
      %20 = dma.done [#allocation3], 256
    $region9: #{tpu_custom_call.1} parent=1 // pred_fallthru
      _
    %v21 = vld [vmem:[#allocation2] sm:$0xff]
    %v22 = vld [vmem:[#allocation2 + $0x8] sm:$0xff]
    %v23 = vmul.f32 %v21, %v21
    %v24 = vmul.f32 %v22, %v22
    %v25 = vrot.slane %v23, 4
    %v26 = vadd.f32 %v23, %v25
    %v27 = vrot.slane %v26, 2
    %v28 = vadd.f32 %v26, %v27
    %v29 = vrot.slane %v28, 1
    %v30 = vadd.f32 %v28, %v29
    %v31 = vrot.slane %v24, 4
    %v32 = vadd.f32 %v24, %v31
    %v33 = vrot.slane %v32, 2
    %v34 = vadd.f32 %v32, %v33
    %v35 = vrot.slane %v34, 1
    %v36 = vadd.f32 %v34, %v35
    %v37 = vmax.f32 %v30, 1e-24
    %v38 = vmax.f32 %v36, 1e-24
    %v39 = vrsqrt.pop %v37
    %v40 = vrsqrt.pop %v38
    %v41 = vmul.f32 %v21, %v39
    %v42 = vmul.f32 %v22, %v40
    %43 = vst [vmem:[#allocation5] sm:$0xff] %v41
    %44 = vst [vmem:[#allocation5 + $0x8] sm:$0xff] %v42
    // Predicated region
    $region10: #{tpu_custom_call.1} parent=1 // pred_check
      _
    $region11: #{tpu_custom_call.1} parent=1 // pred_check_branch
      %46 = sbr.rel (0) target = $region13
    $region12: #{tpu_custom_call.1} parent=1 // pred_region
      %s48 = ssub.s32 256, 256
      %49 = vsyncadd [#allocation4], %s48
      %s51 = sshll.u32 [#allocation5], 4
      %s52 = int_to_ptr.vmem [resolvable:$true] %s51
      %54 = dma.vmem_to_hbm [thread:$0]  %s52, 256, %s1, [#allocation4]
    $region13: #{tpu_custom_call.1} parent=1 // pred_fallthru
      _
    // Predicated region
    $region14: #{tpu_custom_call.1} parent=1 // pred_check
      _
    $region15: #{tpu_custom_call.1} parent=1 // pred_check_branch
      %56 = sbr.rel (0) target = $region17
    $region16: #{tpu_custom_call.1} parent=1 // pred_region
      %57 = dma.done [#allocation4], 256
    $region17: #{tpu_custom_call.1} parent=1 // pred_fallthru
      _
    %58 = vsyncpa [#allocation3], 1
    %59 = vsyncpa [#allocation4], 1

</llo_original>
